<compile_context>
chip_gen: v6e
topology: v6e:2x2x1
jax: 0.10.0
libtpu: 0.0.40
codegen_flags: <defaults>
</compile_context>

<pallas_src>
import jax
import jax.numpy as jnp
from jax.experimental import pallas as pl
from jax.experimental.pallas import tpu as pltpu

_LANE = 128  # TPU lane width / MXU column granularity


def _round_up(n, m):
    return (n + m - 1) // m * m


def qnet_kernel(x_ref, w1_ref, b1_ref, w2_ref, b2_ref, w3_ref, b3_ref, o_ref):
    # fc1 + ReLU  (weights promoted to f32; accumulate, bias-add and ReLU in f32)
    h1 = jnp.dot(x_ref[...], w1_ref[...].astype(jnp.float32),
                 preferred_element_type=jnp.float32)
    h1 = jnp.maximum(h1 + b1_ref[...], 0.0)
    # fc2 + ReLU
    h2 = jnp.dot(h1, w2_ref[...].astype(jnp.float32),
                 preferred_element_type=jnp.float32)
    h2 = jnp.maximum(h2 + b2_ref[...], 0.0)
    # fc3 (no activation): full 128-wide MXU pass, but only the narrow real
    # column range is written back to HBM (o_ref has A_out columns).
    o = jnp.dot(h2, w3_ref[...].astype(jnp.float32),
                preferred_element_type=jnp.float32) + b3_ref[...]
    a_out = o_ref.shape[-1]
    o_ref[...] = o[:, :a_out].astype(o_ref.dtype)


def qnetwork_forward(x, params, *, tb=512, weight_dtype=jnp.bfloat16):
    """Fused QNetwork forward pass as a Pallas TPU kernel.

    x: (B, state_dim) float32
    params: dict with w1 (S,128), b1 (1,128), w2 (128,128), b2 (1,128),
            w3 (128,A), b3 (1,A)   [weights stored as (in_features, out_features),
            equivalent to PyTorch's x @ W.T + b]
    tb: requested batch tile (sweep 512/1024; larger tiles amortize per-step overhead).
    """
    w1, b1, w2, b2, w3, b3 = (params["w1"], params["b1"], params["w2"],
                              params["b2"], params["w3"], params["b3"])
    B, S = x.shape
    H = w1.shape[1]
    A = w3.shape[1]
    out_dtype = x.dtype

    # ---- fc3 padded to a 128-lane MXU pass; HBM output kept narrow ----
    A_pad = _round_up(A, _LANE)
    A_out = _round_up(A, 8)          # narrow, contiguous output block in HBM
    if A_pad != A:
        w3 = jnp.pad(w3, ((0, 0), (0, A_pad - A)))
        b3 = jnp.pad(b3, ((0, 0), (0, A_pad - A)))

    # ---- batch tiling: 16-row aligned; guarantee >=2 grid steps when the
    #      batch allows it so v7x's two TensorCores both get work ----
    B_pad16 = _round_up(B, 16)
    tb_eff = max(16, _round_up(min(tb, B_pad16), 16))
    if B_pad16 >= 32:
        tb_eff = min(tb_eff, _round_up(pl.cdiv(B_pad16, 2), 16))
    B_pad = _round_up(B_pad16, tb_eff)
    if B_pad != B:
        x = jnp.pad(x, ((0, B_pad - B), (0, 0)))

    # ---- weights bf16 (VMEM-resident), activations / biases f32 ----
    xf = x.astype(jnp.float32)
    w1c = w1.astype(weight_dtype)
    w2c = w2.astype(weight_dtype)
    w3c = w3.astype(weight_dtype)
    b1f = b1.astype(jnp.float32)
    b2f = b2.astype(jnp.float32)
    b3f = b3.astype(jnp.float32)

    grid = (B_pad // tb_eff,)
    # VMEM at tb=512: x tile 16 KiB, out tile 16 KiB (both double-buffered),
    # resident weights ~70 KiB (bf16), f32 h1/h2 temporaries ~256 KiB each —
    # far below every generation's scoped VMEM default, so no vmem_limit needed.
    out = pl.pallas_call(
        qnet_kernel,
        out_shape=jax.ShapeDtypeStruct((B_pad, A_out), out_dtype),
        grid_spec=pl.GridSpec(
            grid=grid,
            in_specs=[
                pl.BlockSpec((tb_eff, S), lambda i: (i, 0)),   # x tile over batch
                pl.BlockSpec((S, H), lambda i: (0, 0)),        # w1 (resident)
                pl.BlockSpec((1, H), lambda i: (0, 0)),        # b1
                pl.BlockSpec((H, H), lambda i: (0, 0)),        # w2 (resident)
                pl.BlockSpec((1, H), lambda i: (0, 0)),        # b2
                pl.BlockSpec((H, A_pad), lambda i: (0, 0)),    # w3 padded (resident)
                pl.BlockSpec((1, A_pad), lambda i: (0, 0)),    # b3 padded
            ],
            out_specs=pl.BlockSpec((tb_eff, A_out), lambda i: (i, 0)),
        ),
        compiler_params=pltpu.CompilerParams(
            dimension_semantics=("parallel",)),
    )(xf, w1c, b1f, w2c, b2f, w3c, b3f)

    # Strip batch padding and the (mod-8) padded output columns.
    return out[:B, :A].astype(out_dtype)
    # TODO(synk): a fully transposed formulation (batch on the lane axis) would
    # make the output store lane-dense as well; skipped since the narrow
    # writeback already removes the dominant HBM cost.


def init_params(key, state_dim, action_dim, hidden=128):
    """Deterministic PyTorch-style uniform(-1/sqrt(fan_in), 1/sqrt(fan_in)) init."""
    keys = jax.random.split(key, 6)

    def lin(kw, kb, fan_in, fan_out):
        bound = 1.0 / jnp.sqrt(fan_in)
        w = jax.random.uniform(kw, (fan_in, fan_out), jnp.float32, -bound, bound)
        b = jax.random.uniform(kb, (1, fan_out), jnp.float32, -bound, bound)
        return w, b

    w1, b1 = lin(keys[0], keys[1], state_dim, hidden)
    w2, b2 = lin(keys[2], keys[3], hidden, hidden)
    w3, b3 = lin(keys[4], keys[5], hidden, action_dim)
    return {"w1": w1, "b1": b1, "w2": w2, "b2": b2, "w3": w3, "b3": b3}


def reference_forward(x, p):
    h1 = jnp.maximum(x @ p["w1"] + p["b1"], 0.0)
    h2 = jnp.maximum(h1 @ p["w2"] + p["b2"], 0.0)
    return h2 @ p["w3"] + p["b3"]


if __name__ == "__main__":
    key = jax.random.PRNGKey(0)
    kx, kp = jax.random.split(key)

    batch, state_dim, action_dim = 8, 8, 4
    x = jax.random.normal(kx, (batch, state_dim), dtype=jnp.float32)
    params = init_params(kp, state_dim, action_dim)

    q = jax.block_until_ready(qnetwork_forward(x, params))

    q_ref = reference_forward(x, params)
    assert q.shape == (batch, action_dim)
    # Only weights are bf16 (activations stay f32) -> tight tolerance vs f32 reference.
    assert jnp.allclose(q, q_ref, atol=2e-2, rtol=2e-2), "mismatch vs reference"

    print("KERNEL_OK")
</pallas_src>

<mosaic_0001>
module attributes {stable_mosaic.version = 11 : i64} {
  func.func @qnet_kernel(%arg0: i32, %arg1: memref<16x8xf32, #tpu.memory_space<vmem>>, %arg2: memref<8x128xbf16, #tpu.memory_space<vmem>>, %arg3: memref<1x128xf32, #tpu.memory_space<vmem>>, %arg4: memref<128x128xbf16, #tpu.memory_space<vmem>>, %arg5: memref<1x128xf32, #tpu.memory_space<vmem>>, %arg6: memref<128x128xbf16, #tpu.memory_space<vmem>>, %arg7: memref<1x128xf32, #tpu.memory_space<vmem>>, %arg8: memref<16x8xf32, #tpu.memory_space<vmem>>) attributes {dimension_semantics = [#tpu.dimension_semantics<parallel>], iteration_bounds = array<i64: 1>, scalar_prefetch = 0 : i64, scratch_operands = 0 : i64, tpu.core_type = #tpu.core_type<tc>, window_params = [{transform_indices = @transform_0, window_bounds = array<i64: 16, 8>}, {pipeline_mode = #tpu.pipeline_mode<synchronous>, transform_indices = @transform_1, window_bounds = array<i64: 8, 128>}, {pipeline_mode = #tpu.pipeline_mode<synchronous>, transform_indices = @transform_2, window_bounds = array<i64: 1, 128>}, {pipeline_mode = #tpu.pipeline_mode<synchronous>, transform_indices = @transform_3, window_bounds = array<i64: 128, 128>}, {pipeline_mode = #tpu.pipeline_mode<synchronous>, transform_indices = @transform_4, window_bounds = array<i64: 1, 128>}, {pipeline_mode = #tpu.pipeline_mode<synchronous>, transform_indices = @transform_5, window_bounds = array<i64: 128, 128>}, {pipeline_mode = #tpu.pipeline_mode<synchronous>, transform_indices = @transform_6, window_bounds = array<i64: 1, 128>}, {transform_indices = @transform_7, window_bounds = array<i64: 16, 8>}]} {
    %c0 = arith.constant 0 : index
    %c0_0 = arith.constant 0 : index
    %0 = vector.load %arg1[%c0, %c0_0] : memref<16x8xf32, #tpu.memory_space<vmem>>, vector<16x8xf32>
    %c0_1 = arith.constant 0 : index
    %c0_2 = arith.constant 0 : index
    %1 = vector.load %arg2[%c0_1, %c0_2] : memref<8x128xbf16, #tpu.memory_space<vmem>>, vector<8x128xbf16>
    %2 = arith.extf %1 : vector<8x128xbf16> to vector<8x128xf32>
    %cst = arith.constant dense<0.000000e+00> : vector<16x128xf32>
    %3 = tpu.matmul %0, %2, %cst {dimension_numbers = #tpu.dot_dimension_numbers<[1], [0], [0], [1], [0, 0, 1, 1], [], []>} : vector<16x8xf32>, vector<8x128xf32>, vector<16x128xf32> -> vector<16x128xf32>
    %c0_3 = arith.constant 0 : index
    %c0_4 = arith.constant 0 : index
    %4 = vector.load %arg3[%c0_3, %c0_4] : memref<1x128xf32, #tpu.memory_space<vmem>>, vector<1x128xf32>
    %5 = vector.broadcast %4 : vector<1x128xf32> to vector<16x128xf32>
    %6 = arith.addf %3, %5 : vector<16x128xf32>
    %cst_5 = arith.constant 0.000000e+00 : f32
    %7 = vector.broadcast %cst_5 : f32 to vector<16x128xf32>
    %8 = arith.maximumf %6, %7 : vector<16x128xf32>
    %c0_6 = arith.constant 0 : index
    %c0_7 = arith.constant 0 : index
    %9 = vector.load %arg4[%c0_6, %c0_7] : memref<128x128xbf16, #tpu.memory_space<vmem>>, vector<128x128xbf16>
    %10 = arith.extf %9 : vector<128x128xbf16> to vector<128x128xf32>
    %cst_8 = arith.constant dense<0.000000e+00> : vector<16x128xf32>
    %11 = tpu.matmul %8, %10, %cst_8 {dimension_numbers = #tpu.dot_dimension_numbers<[1], [0], [0], [1], [0, 0, 1, 1], [], []>} : vector<16x128xf32>, vector<128x128xf32>, vector<16x128xf32> -> vector<16x128xf32>
    %c0_9 = arith.constant 0 : index
    %c0_10 = arith.constant 0 : index
    %12 = vector.load %arg5[%c0_9, %c0_10] : memref<1x128xf32, #tpu.memory_space<vmem>>, vector<1x128xf32>
    %13 = vector.broadcast %12 : vector<1x128xf32> to vector<16x128xf32>
    %14 = arith.addf %11, %13 : vector<16x128xf32>
    %cst_11 = arith.constant 0.000000e+00 : f32
    %15 = vector.broadcast %cst_11 : f32 to vector<16x128xf32>
    %16 = arith.maximumf %14, %15 : vector<16x128xf32>
    %c0_12 = arith.constant 0 : index
    %c0_13 = arith.constant 0 : index
    %17 = vector.load %arg6[%c0_12, %c0_13] : memref<128x128xbf16, #tpu.memory_space<vmem>>, vector<128x128xbf16>
    %18 = arith.extf %17 : vector<128x128xbf16> to vector<128x128xf32>
    %cst_14 = arith.constant dense<0.000000e+00> : vector<16x128xf32>
    %19 = tpu.matmul %16, %18, %cst_14 {dimension_numbers = #tpu.dot_dimension_numbers<[1], [0], [0], [1], [0, 0, 1, 1], [], []>} : vector<16x128xf32>, vector<128x128xf32>, vector<16x128xf32> -> vector<16x128xf32>
    %c0_15 = arith.constant 0 : index
    %c0_16 = arith.constant 0 : index
    %20 = vector.load %arg7[%c0_15, %c0_16] : memref<1x128xf32, #tpu.memory_space<vmem>>, vector<1x128xf32>
    %21 = vector.broadcast %20 : vector<1x128xf32> to vector<16x128xf32>
    %22 = arith.addf %19, %21 : vector<16x128xf32>
    %23 = vector.extract_strided_slice %22 {offsets = [0, 0], sizes = [16, 8], strides = [1, 1]} : vector<16x128xf32> to vector<16x8xf32>
    %c0_17 = arith.constant 0 : index
    %c0_18 = arith.constant 0 : index
    %24 = vector.load %arg8[%c0_17, %c0_18] : memref<16x8xf32, #tpu.memory_space<vmem>>, vector<16x8xf32>
    tpu.vector_store %arg8[%c0_17, %c0_18], %23 {strides = array<i32>} : memref<16x8xf32, #tpu.memory_space<vmem>>, vector<16x8xf32>,
    return
  }
  func.func @transform_0(%arg0: i32) -> (i32, i32) {
    %c0_i32 = arith.constant 0 : i32
    %c0_i32_0 = arith.constant 0 : i32
    return %arg0, %c0_i32 : i32, i32
  }
  func.func @transform_1(%arg0: i32) -> (i32, i32) {
    %c0_i32 = arith.constant 0 : i32
    %c0_i32_0 = arith.constant 0 : i32
    %c0_i32_1 = arith.constant 0 : i32
    return %c0_i32, %c0_i32_0 : i32, i32
  }
  func.func @transform_2(%arg0: i32) -> (i32, i32) {
    %c0_i32 = arith.constant 0 : i32
    %c0_i32_0 = arith.constant 0 : i32
    %c0_i32_1 = arith.constant 0 : i32
    return %c0_i32, %c0_i32_0 : i32, i32
  }
  func.func @transform_3(%arg0: i32) -> (i32, i32) {
    %c0_i32 = arith.constant 0 : i32
    %c0_i32_0 = arith.constant 0 : i32
    %c0_i32_1 = arith.constant 0 : i32
    return %c0_i32, %c0_i32_0 : i32, i32
  }
  func.func @transform_4(%arg0: i32) -> (i32, i32) {
    %c0_i32 = arith.constant 0 : i32
    %c0_i32_0 = arith.constant 0 : i32
    %c0_i32_1 = arith.constant 0 : i32
    return %c0_i32, %c0_i32_0 : i32, i32
  }
  func.func @transform_5(%arg0: i32) -> (i32, i32) {
    %c0_i32 = arith.constant 0 : i32
    %c0_i32_0 = arith.constant 0 : i32
    %c0_i32_1 = arith.constant 0 : i32
    return %c0_i32, %c0_i32_0 : i32, i32
  }
  func.func @transform_6(%arg0: i32) -> (i32, i32) {
    %c0_i32 = arith.constant 0 : i32
    %c0_i32_0 = arith.constant 0 : i32
    %c0_i32_1 = arith.constant 0 : i32
    return %c0_i32, %c0_i32_0 : i32, i32
  }
  func.func @transform_7(%arg0: i32) -> (i32, i32) {
    %c0_i32 = arith.constant 0 : i32
    %c0_i32_0 = arith.constant 0 : i32
    return %arg0, %c0_i32 : i32, i32
  }
}

</mosaic_0001>

<llo_original>
// kernel: tpu_custom_call.1
$region0: #{tpu_custom_call.1}
  #allocation0 [shape = 'u32[]', space=smem, size = 0x4, offset = 0x4, fixed_abs, tag = 'smem constant byte address 0x4 - core index']
  #allocation1 [shape = 'u32[144,128]{1,0:T(1,128)}', space=vmem, size = 0x12000, scoped, tag = 'internal scratch']
  %s0 = inlined_call_operand.vmem [shape: f32[16,8], index: 0, kind: input, shape index: {}]
  %s1 = inlined_call_operand.vmem [shape: bf16[8,128], index: 1, kind: input, shape index: {}]
  %s2 = inlined_call_operand.vmem [shape: f32[1,128], index: 2, kind: input, shape index: {}]
  %s3 = inlined_call_operand.hbm [shape: bf16[128,128], index: 3, kind: input, shape index: {}]
  %s4 = inlined_call_operand.vmem [shape: f32[1,128], index: 4, kind: input, shape index: {}]
  %s5 = inlined_call_operand.hbm [shape: bf16[128,128], index: 5, kind: input, shape index: {}]
  %s6 = inlined_call_operand.vmem [shape: f32[1,128], index: 6, kind: input, shape index: {}]
  %s7 = inlined_call_operand.vmem [shape: f32[16,8], index: 7, kind: output, shape index: {}]
  %s8 = sld [smem:[#allocation0]]
  $region46: #{tpu_custom_call.1} parent=0
    _
  %s10 = ssub.s32 1, %s8
  %s11 = scalar_select 0, %s10, %s8
  $region1: #{tpu_custom_call.1} parent=0
    #allocation2 [shape = 'u8[32768]{0}', space=vmem, size = 0x8000, scoped, tag = 'input window, operand 3, single buffered']
    #allocation3 [shape = 's32[1]{0}', space=sflag, size = 0x4, scoped, tag = 'scoped memory for tpu_custom_call.1']
    #allocation4 [shape = 'u8[32768]{0}', space=vmem, size = 0x8000, scoped, tag = 'input window, operand 5, single buffered']
    #allocation5 [shape = 's32[1]{0}', space=sflag, size = 0x4, scoped, tag = 'scoped memory for tpu_custom_call.1']
    %12 = vsyncpa [#allocation3], 0
    %13 = vsyncpa [#allocation5], 0
    // Predicated region
    $region2: #{tpu_custom_call.1} parent=1 // pred_check
      _
    $region3: #{tpu_custom_call.1} parent=1 // pred_check_branch
      %15 = sbr.rel (0) target = $region5
    $region4: #{tpu_custom_call.1} parent=1 // pred_region
      _
    $region5: #{tpu_custom_call.1} parent=1 // pred_fallthru
      _
    // Predicated region
    $region6: #{tpu_custom_call.1} parent=1 // pred_check
      _
    $region7: #{tpu_custom_call.1} parent=1 // pred_check_branch
      %17 = sbr.rel (0) target = $region9
    $region8: #{tpu_custom_call.1} parent=1 // pred_region
      _
    $region9: #{tpu_custom_call.1} parent=1 // pred_fallthru
      _
    // Predicated region
    $region10: #{tpu_custom_call.1} parent=1 // pred_check
      _
    $region11: #{tpu_custom_call.1} parent=1 // pred_check_branch
      %19 = sbr.rel (0) target = $region13
    $region12: #{tpu_custom_call.1} parent=1 // pred_region
      _
    $region13: #{tpu_custom_call.1} parent=1 // pred_fallthru
      _
    // Predicated region
    $region14: #{tpu_custom_call.1} parent=1 // pred_check
      _
    $region15: #{tpu_custom_call.1} parent=1 // pred_check_branch
      %21 = sbr.rel (0) target = $region17
    $region16: #{tpu_custom_call.1} parent=1 // pred_region
      %s23 = ssub.s32 1024, 1024
      %24 = vsyncadd [#allocation3], %s23
      %s25 = sshll.u32 [#allocation2], 4
      %s26 = int_to_ptr.vmem [resolvable:$true] %s25
      %31 = dma.hbm_to_vmem [thread:$0]  %s3, 1024, %s26, [#allocation3], 64, 64, 4
    $region17: #{tpu_custom_call.1} parent=1 // pred_fallthru
      _
    // Predicated region
    $region18: #{tpu_custom_call.1} parent=1 // pred_check
      _
    $region19: #{tpu_custom_call.1} parent=1 // pred_check_branch
      %33 = sbr.rel (0) target = $region21
    $region20: #{tpu_custom_call.1} parent=1 // pred_region
      _
    $region21: #{tpu_custom_call.1} parent=1 // pred_fallthru
      _
    // Predicated region
    $region22: #{tpu_custom_call.1} parent=1 // pred_check
      _
    $region23: #{tpu_custom_call.1} parent=1 // pred_check_branch
      %35 = sbr.rel (0) target = $region25
    $region24: #{tpu_custom_call.1} parent=1 // pred_region
      %s37 = ssub.s32 1024, 1024
      %38 = vsyncadd [#allocation5], %s37
      %s39 = sshll.u32 [#allocation4], 4
      %s40 = int_to_ptr.vmem [resolvable:$true] %s39
      %45 = dma.hbm_to_vmem [thread:$0]  %s5, 1024, %s40, [#allocation5], 64, 64, 4
    $region25: #{tpu_custom_call.1} parent=1 // pred_fallthru
      _
    // Predicated region
    $region26: #{tpu_custom_call.1} parent=1 // pred_check
      _
    $region27: #{tpu_custom_call.1} parent=1 // pred_check_branch
      %47 = sbr.rel (0) target = $region29
    $region28: #{tpu_custom_call.1} parent=1 // pred_region
      _
    $region29: #{tpu_custom_call.1} parent=1 // pred_fallthru
      _
    // Predicated region
    $region30: #{tpu_custom_call.1} parent=1 // pred_check
      _
    $region31: #{tpu_custom_call.1} parent=1 // pred_check_branch
      %49 = sbr.rel (0) target = $region33
    $region32: #{tpu_custom_call.1} parent=1 // pred_region
      %50 = dma.done [#allocation3], 1024
    $region33: #{tpu_custom_call.1} parent=1 // pred_fallthru
      _
    // Predicated region
    $region34: #{tpu_custom_call.1} parent=1 // pred_check
      _
    $region35: #{tpu_custom_call.1} parent=1 // pred_check_branch
      %52 = sbr.rel (0) target = $region37
    $region36: #{tpu_custom_call.1} parent=1 // pred_region
      %53 = dma.done [#allocation5], 1024
    $region37: #{tpu_custom_call.1} parent=1 // pred_fallthru
      _
    %v54 = vld [vmem:[%s0] sm:$0xff]
    %v55 = vld [vmem:[%s0 + $0x8] sm:$0xff]
    %v56 = vld [vmem:[%s1] sm:$0xf]
    %v57 = vunpack.c.l.bf16 %v56
    %v58 = vld [vmem:[%s2] sm:$0x1]
    %v60 = vlaneseq
    %v61 = vshrl.u32 %v60, 7
    %v62 = vsub.s32 0, %v61
    %v63 = vrot.slane %v58, %v62
    %vm65 = vcmask 64512
    %v67 = vsel %vm65, %v54, 0
    %v70 = vsel %vm65, %v55, 0
    %72 = vmatprep.subr.mxu0 0.0
    %73 = vmatpush1.msra.mxu0 0.0
    %74 = vmatprep.subr.mxu0 0.0
    %75 = vmatpush1.msra.mxu0 0.0
    %76 = vmatprep.subr.mxu0 0.0
    %77 = vmatpush1.msra.mxu0 0.0
    %78 = vmatprep.subr.mxu0 0.0
    %79 = vmatpush1.msra.mxu0 0.0
    %80 = vmatprep.subr.mxu0 0.0
    %81 = vmatpush1.msra.mxu0 0.0
    %82 = vmatprep.subr.mxu0 0.0
    %83 = vmatpush1.msra.mxu0 0.0
    %84 = vmatprep.subr.mxu0 0.0
    %85 = vmatpush1.msra.mxu0 0.0
    %86 = vmatprep.subr.mxu0 0.0
    %87 = vmatpush1.msra.mxu0 0.0
    %88 = vmatprep.subr.mxu0 0.0
    %89 = vmatpush1.msra.mxu0 0.0
    %90 = vmatprep.subr.mxu0 0.0
    %91 = vmatpush1.msra.mxu0 0.0
    %92 = vmatprep.subr.mxu0 0.0
    %93 = vmatpush1.msra.mxu0 0.0
    %94 = vmatprep.subr.mxu0 0.0
    %95 = vmatpush1.msra.mxu0 0.0
    %96 = vmatprep.subr.mxu0 0.0
    %97 = vmatpush1.msra.mxu0 0.0
    %98 = vmatprep.subr.mxu0 0.0
    %99 = vmatpush1.msra.mxu0 0.0
    %100 = vmatprep.subr.mxu0 0.0
    %101 = vmatpush1.msra.mxu0 0.0
    %102 = vmatprep.subr.mxu0 0.0
    %103 = vmatpush1.msra.mxu0 %v57
    %104 = vmatprep.subr.mxu0 0.0
    %105 = vmatpush2.msra.mxu0 0.0
    %106 = vmatprep.subr.mxu0 0.0
    %107 = vmatpush2.msra.mxu0 0.0
    %108 = vmatprep.subr.mxu0 0.0
    %109 = vmatpush2.msra.mxu0 0.0
    %110 = vmatprep.subr.mxu0 0.0
    %111 = vmatpush2.msra.mxu0 0.0
    %112 = vmatprep.subr.mxu0 0.0
    %113 = vmatpush2.msra.mxu0 0.0
    %114 = vmatprep.subr.mxu0 0.0
    %115 = vmatpush2.msra.mxu0 0.0
    %116 = vmatprep.subr.mxu0 0.0
    %117 = vmatpush2.msra.mxu0 0.0
    %118 = vmatprep.subr.mxu0 0.0
    %119 = vmatpush2.msra.mxu0 0.0
    %120 = vmatprep.subr.mxu0 0.0
    %121 = vmatpush2.msra.mxu0 0.0
    %122 = vmatprep.subr.mxu0 0.0
    %123 = vmatpush2.msra.mxu0 0.0
    %124 = vmatprep.subr.mxu0 0.0
    %125 = vmatpush2.msra.mxu0 0.0
    %126 = vmatprep.subr.mxu0 0.0
    %127 = vmatpush2.msra.mxu0 0.0
    %128 = vmatprep.subr.mxu0 0.0
    %129 = vmatpush2.msra.mxu0 0.0
    %130 = vmatprep.subr.mxu0 0.0
    %131 = vmatpush2.msra.mxu0 0.0
    %132 = vmatprep.subr.mxu0 0.0
    %133 = vmatpush2.msra.mxu0 0.0
    %134 = vmatprep.subr.mxu0 0.0
    %135 = vmatpush2.msra.mxu0 0.0
    %136 = vmatprep.mubr.f32.mxu0 0.0
    %137 = vmatmul.mubr.f32.gmra.mxu0 %v67
    %v138 = vpop.f32.mrf.mxu0
    %v139 = vadd.f32 %v63, %v138
    %v140 = vpop.f32.mrf.mxu0
    %141 = vmatprep.mubr.f32.mxu0 0.0
    %142 = vmatmul.mubr.f32.gmra.mxu0 %v70
    %v143 = vpop.f32.mrf.mxu0
    %v144 = vadd.f32 %v63, %v143
    %v145 = vpop.f32.mrf.mxu0
    %146 = vdwg.mxu0
    %v147 = vmax.f32 %v139, 0.0
    %v148 = vmax.f32 %v144, 0.0
    %v149 = vld [vmem:[#allocation2] sm:$0xf]
    %v150 = vld [vmem:[#allocation2 + $0x4] sm:$0xf]
    %v151 = vld [vmem:[#allocation2 + $0x8] sm:$0xf]
    %v152 = vld [vmem:[#allocation2 + $0xc] sm:$0xf]
    %v153 = vld [vmem:[#allocation2 + $0x10] sm:$0xf]
    %v154 = vld [vmem:[#allocation2 + $0x14] sm:$0xf]
    %v155 = vld [vmem:[#allocation2 + $0x18] sm:$0xf]
    %v156 = vld [vmem:[#allocation2 + $0x1c] sm:$0xf]
    %v157 = vld [vmem:[#allocation2 + $0x20] sm:$0xf]
    %v158 = vld [vmem:[#allocation2 + $0x24] sm:$0xf]
    %v159 = vld [vmem:[#allocation2 + $0x28] sm:$0xf]
    %v160 = vld [vmem:[#allocation2 + $0x2c] sm:$0xf]
    %v161 = vld [vmem:[#allocation2 + $0x30] sm:$0xf]
    %v162 = vld [vmem:[#allocation2 + $0x34] sm:$0xf]
    %v163 = vld [vmem:[#allocation2 + $0x38] sm:$0xf]
    %v164 = vld [vmem:[#allocation2 + $0x3c] sm:$0xf]
    %v165 = vunpack.c.l.bf16 %v149
    %v166 = vunpack.c.l.bf16 %v150
    %v167 = vunpack.c.l.bf16 %v151
    %v168 = vunpack.c.l.bf16 %v152
    %v169 = vunpack.c.l.bf16 %v153
    %v170 = vunpack.c.l.bf16 %v154
    %v171 = vunpack.c.l.bf16 %v155
    %v172 = vunpack.c.l.bf16 %v156
    %v173 = vunpack.c.l.bf16 %v157
    %v174 = vunpack.c.l.bf16 %v158
    %v175 = vunpack.c.l.bf16 %v159
    %v176 = vunpack.c.l.bf16 %v160
    %v177 = vunpack.c.l.bf16 %v161
    %v178 = vunpack.c.l.bf16 %v162
    %v179 = vunpack.c.l.bf16 %v163
    %v180 = vunpack.c.l.bf16 %v164
    %v181 = vld [vmem:[%s4] sm:$0x1]
    %v183 = vlaneseq
    %v184 = vshrl.u32 %v183, 7
    %v185 = vsub.s32 0, %v184
    %v186 = vrot.slane %v181, %v185
    %188 = vmatprep.subr.mxu0 0.0
    %189 = vmatpush1.msra.mxu0 %v180
    %190 = vmatprep.subr.mxu0 0.0
    %191 = vmatpush1.msra.mxu0 %v179
    %192 = vmatprep.subr.mxu0 0.0
    %193 = vmatpush1.msra.mxu0 %v178
    %194 = vmatprep.subr.mxu0 0.0
    %195 = vmatpush1.msra.mxu0 %v177
    %196 = vmatprep.subr.mxu0 0.0
    %197 = vmatpush1.msra.mxu0 %v176
    %198 = vmatprep.subr.mxu0 0.0
    %199 = vmatpush1.msra.mxu0 %v175
    %200 = vmatprep.subr.mxu0 0.0
    %201 = vmatpush1.msra.mxu0 %v174
    %202 = vmatprep.subr.mxu0 0.0
    %203 = vmatpush1.msra.mxu0 %v173
    %204 = vmatprep.subr.mxu0 0.0
    %205 = vmatpush1.msra.mxu0 %v172
    %206 = vmatprep.subr.mxu0 0.0
    %207 = vmatpush1.msra.mxu0 %v171
    %208 = vmatprep.subr.mxu0 0.0
    %209 = vmatpush1.msra.mxu0 %v170
    %210 = vmatprep.subr.mxu0 0.0
    %211 = vmatpush1.msra.mxu0 %v169
    %212 = vmatprep.subr.mxu0 0.0
    %213 = vmatpush1.msra.mxu0 %v168
    %214 = vmatprep.subr.mxu0 0.0
    %215 = vmatpush1.msra.mxu0 %v167
    %216 = vmatprep.subr.mxu0 0.0
    %217 = vmatpush1.msra.mxu0 %v166
    %218 = vmatprep.subr.mxu0 0.0
    %219 = vmatpush1.msra.mxu0 %v165
    %220 = vmatprep.subr.mxu0 0.0
    %221 = vmatpush2.msra.mxu0 0.0
    %222 = vmatprep.subr.mxu0 0.0
    %223 = vmatpush2.msra.mxu0 0.0
    %224 = vmatprep.subr.mxu0 0.0
    %225 = vmatpush2.msra.mxu0 0.0
    %226 = vmatprep.subr.mxu0 0.0
    %227 = vmatpush2.msra.mxu0 0.0
    %228 = vmatprep.subr.mxu0 0.0
    %229 = vmatpush2.msra.mxu0 0.0
    %230 = vmatprep.subr.mxu0 0.0
    %231 = vmatpush2.msra.mxu0 0.0
    %232 = vmatprep.subr.mxu0 0.0
    %233 = vmatpush2.msra.mxu0 0.0
    %234 = vmatprep.subr.mxu0 0.0
    %235 = vmatpush2.msra.mxu0 0.0
    %236 = vmatprep.subr.mxu0 0.0
    %237 = vmatpush2.msra.mxu0 0.0
    %238 = vmatprep.subr.mxu0 0.0
    %239 = vmatpush2.msra.mxu0 0.0
    %240 = vmatprep.subr.mxu0 0.0
    %241 = vmatpush2.msra.mxu0 0.0
    %242 = vmatprep.subr.mxu0 0.0
    %243 = vmatpush2.msra.mxu0 0.0
    %244 = vmatprep.subr.mxu0 0.0
    %245 = vmatpush2.msra.mxu0 0.0
    %246 = vmatprep.subr.mxu0 0.0
    %247 = vmatpush2.msra.mxu0 0.0
    %248 = vmatprep.subr.mxu0 0.0
    %249 = vmatpush2.msra.mxu0 0.0
    %250 = vmatprep.subr.mxu0 0.0
    %251 = vmatpush2.msra.mxu0 0.0
    %252 = vmatprep.mubr.f32.mxu0 0.0
    %253 = vmatmul.mubr.f32.gmra.mxu0 %v147
    %v254 = vpop.f32.mrf.mxu0
    %v255 = vadd.f32 %v186, %v254
    %v256 = vpop.f32.mrf.mxu0
    %257 = vmatprep.mubr.f32.mxu0 0.0
    %258 = vmatmul.mubr.f32.gmra.mxu0 %v148
    %v259 = vpop.f32.mrf.mxu0
    %v260 = vadd.f32 %v186, %v259
    %v261 = vpop.f32.mrf.mxu0
    %262 = vdwg.mxu0
    %v263 = vmax.f32 %v255, 0.0
    %v264 = vmax.f32 %v260, 0.0
    %v265 = vld [vmem:[#allocation4] sm:$0xf]
    %v266 = vld [vmem:[#allocation4 + $0x4] sm:$0xf]
    %v267 = vld [vmem:[#allocation4 + $0x8] sm:$0xf]
    %v268 = vld [vmem:[#allocation4 + $0xc] sm:$0xf]
    %v269 = vld [vmem:[#allocation4 + $0x10] sm:$0xf]
    %v270 = vld [vmem:[#allocation4 + $0x14] sm:$0xf]
    %v271 = vld [vmem:[#allocation4 + $0x18] sm:$0xf]
    %v272 = vld [vmem:[#allocation4 + $0x1c] sm:$0xf]
    %v273 = vld [vmem:[#allocation4 + $0x20] sm:$0xf]
    %v274 = vld [vmem:[#allocation4 + $0x24] sm:$0xf]
    %v275 = vld [vmem:[#allocation4 + $0x28] sm:$0xf]
    %v276 = vld [vmem:[#allocation4 + $0x2c] sm:$0xf]
    %v277 = vld [vmem:[#allocation4 + $0x30] sm:$0xf]
    %v278 = vld [vmem:[#allocation4 + $0x34] sm:$0xf]
    %v279 = vld [vmem:[#allocation4 + $0x38] sm:$0xf]
    %v280 = vld [vmem:[#allocation4 + $0x3c] sm:$0xf]
    %v281 = vunpack.c.l.bf16 %v265
    %v282 = vunpack.c.l.bf16 %v266
    %v283 = vunpack.c.l.bf16 %v267
    %v284 = vunpack.c.l.bf16 %v268
    %v285 = vunpack.c.l.bf16 %v269
    %v286 = vunpack.c.l.bf16 %v270
    %v287 = vunpack.c.l.bf16 %v271
    %v288 = vunpack.c.l.bf16 %v272
    %v289 = vunpack.c.l.bf16 %v273
    %v290 = vunpack.c.l.bf16 %v274
    %v291 = vunpack.c.l.bf16 %v275
    %v292 = vunpack.c.l.bf16 %v276
    %v293 = vunpack.c.l.bf16 %v277
    %v294 = vunpack.c.l.bf16 %v278
    %v295 = vunpack.c.l.bf16 %v279
    %v296 = vunpack.c.l.bf16 %v280
    %v297 = vld [vmem:[%s6] sm:$0x1]
    %v299 = vlaneseq
    %v300 = vshrl.u32 %v299, 7
    %v301 = vsub.s32 0, %v300
    %v302 = vrot.slane %v297, %v301
    %304 = vmatprep.subr.mxu0 0.0
    %305 = vmatpush1.msra.mxu0 %v296
    %306 = vmatprep.subr.mxu0 0.0
    %307 = vmatpush1.msra.mxu0 %v295
    %308 = vmatprep.subr.mxu0 0.0
    %309 = vmatpush1.msra.mxu0 %v294
    %310 = vmatprep.subr.mxu0 0.0
    %311 = vmatpush1.msra.mxu0 %v293
    %312 = vmatprep.subr.mxu0 0.0
    %313 = vmatpush1.msra.mxu0 %v292
    %314 = vmatprep.subr.mxu0 0.0
    %315 = vmatpush1.msra.mxu0 %v291
    %316 = vmatprep.subr.mxu0 0.0
    %317 = vmatpush1.msra.mxu0 %v290
    %318 = vmatprep.subr.mxu0 0.0
    %319 = vmatpush1.msra.mxu0 %v289
    %320 = vmatprep.subr.mxu0 0.0
    %321 = vmatpush1.msra.mxu0 %v288
    %322 = vmatprep.subr.mxu0 0.0
    %323 = vmatpush1.msra.mxu0 %v287
    %324 = vmatprep.subr.mxu0 0.0
    %325 = vmatpush1.msra.mxu0 %v286
    %326 = vmatprep.subr.mxu0 0.0
    %327 = vmatpush1.msra.mxu0 %v285
    %328 = vmatprep.subr.mxu0 0.0
    %329 = vmatpush1.msra.mxu0 %v284
    %330 = vmatprep.subr.mxu0 0.0
    %331 = vmatpush1.msra.mxu0 %v283
    %332 = vmatprep.subr.mxu0 0.0
    %333 = vmatpush1.msra.mxu0 %v282
    %334 = vmatprep.subr.mxu0 0.0
    %335 = vmatpush1.msra.mxu0 %v281
    %336 = vmatprep.subr.mxu0 0.0
    %337 = vmatpush2.msra.mxu0 0.0
    %338 = vmatprep.subr.mxu0 0.0
    %339 = vmatpush2.msra.mxu0 0.0
    %340 = vmatprep.subr.mxu0 0.0
    %341 = vmatpush2.msra.mxu0 0.0
    %342 = vmatprep.subr.mxu0 0.0
    %343 = vmatpush2.msra.mxu0 0.0
    %344 = vmatprep.subr.mxu0 0.0
    %345 = vmatpush2.msra.mxu0 0.0
    %346 = vmatprep.subr.mxu0 0.0
    %347 = vmatpush2.msra.mxu0 0.0
    %348 = vmatprep.subr.mxu0 0.0
    %349 = vmatpush2.msra.mxu0 0.0
    %350 = vmatprep.subr.mxu0 0.0
    %351 = vmatpush2.msra.mxu0 0.0
    %352 = vmatprep.subr.mxu0 0.0
    %353 = vmatpush2.msra.mxu0 0.0
    %354 = vmatprep.subr.mxu0 0.0
    %355 = vmatpush2.msra.mxu0 0.0
    %356 = vmatprep.subr.mxu0 0.0
    %357 = vmatpush2.msra.mxu0 0.0
    %358 = vmatprep.subr.mxu0 0.0
    %359 = vmatpush2.msra.mxu0 0.0
    %360 = vmatprep.subr.mxu0 0.0
    %361 = vmatpush2.msra.mxu0 0.0
    %362 = vmatprep.subr.mxu0 0.0
    %363 = vmatpush2.msra.mxu0 0.0
    %364 = vmatprep.subr.mxu0 0.0
    %365 = vmatpush2.msra.mxu0 0.0
    %366 = vmatprep.subr.mxu0 0.0
    %367 = vmatpush2.msra.mxu0 0.0
    %368 = vmatprep.mubr.f32.mxu0 0.0
    %369 = vmatmul.mubr.f32.gmra.mxu0 %v263
    %v370 = vpop.f32.mrf.mxu0
    %v371 = vadd.f32 %v302, %v370
    %v372 = vpop.f32.mrf.mxu0
    %373 = vmatprep.mubr.f32.mxu0 0.0
    %374 = vmatmul.mubr.f32.gmra.mxu0 %v264
    %v375 = vpop.f32.mrf.mxu0
    %v376 = vadd.f32 %v302, %v375
    %v377 = vpop.f32.mrf.mxu0
    %378 = vdwg.mxu0
    %379 = vst.msk [vmem:[%s7] sm:$0xff] %vm65, %v371
    %380 = vst.msk [vmem:[%s7 + $0x8] sm:$0xff] %vm65, %v376
    // Predicated region
    $region38: #{tpu_custom_call.1} parent=1 // pred_check
      _
    $region39: #{tpu_custom_call.1} parent=1 // pred_check_branch
      %382 = sbr.rel (0) target = $region41
    $region40: #{tpu_custom_call.1} parent=1 // pred_region
      _
    $region41: #{tpu_custom_call.1} parent=1 // pred_fallthru
      _
    // Predicated region
    $region42: #{tpu_custom_call.1} parent=1 // pred_check
      _
    $region43: #{tpu_custom_call.1} parent=1 // pred_check_branch
      %384 = sbr.rel (0) target = $region45
    $region44: #{tpu_custom_call.1} parent=1 // pred_region
      _
    $region45: #{tpu_custom_call.1} parent=1 // pred_fallthru
      _
    %385 = vsyncpa [#allocation3], 1
    %386 = vsyncpa [#allocation5], 1

</llo_original>
